<compile_context>
chip_gen: v7x
topology: tpu7x:2x2x1
jax: 0.10.0
libtpu: 0.0.40
codegen_flags: <defaults>
</compile_context>

<pallas_src>
import jax
import jax.numpy as jnp
from jax.experimental import pallas as pl
from jax.experimental.pallas import tpu as pltpu

INV_GAUSS_VAR = 0.54
C_CONST = 1.0                       # == 1.0, folded away in the kernel
_NEG_HALF_VAR = -0.5 * INV_GAUSS_VAR   # -0.27, single fused multiplier


def _gauss_pdf_kernel(mu_ref, x_ref, o_ref):
    # mu_ref: (2,) f32 in SMEM (scalars)
    # x_ref : (2, TR, 128) f32 in VMEM  -- feature dim leading, samples lane-dense
    # o_ref : (TR, 128) in VMEM
    d0 = x_ref[0] - mu_ref[0]        # (TR, 128)  pure VPU
    d1 = x_ref[1] - mu_ref[1]        # (TR, 128)
    q = d0 * d0 + d1 * d1            # (TR, 128)
    # c == 1.0 so no leading multiply; exp goes to the EUP slot.
    o_ref[...] = jnp.exp(_NEG_HALF_VAR * q).astype(o_ref.dtype)


def my_gaussian_pdf(x, mu, *, max_tile_rows=1024):
    """JAX wrapper reproducing MyGaussianPDF.forward with a Pallas kernel.

    x : (N, 2) array, mu : (2,) array  ->  (N,) array of x.dtype.
    """
    N, D = x.shape
    assert D == 2, "MyGaussianPDF is defined for 2-D points"
    out_dtype = x.dtype

    # Keep all arithmetic in f32 (v5e has no bf16 VPU/EUP path).
    xf = x.astype(jnp.float32)
    muf = jnp.asarray(mu, dtype=jnp.float32).reshape(2)

    # Lane-dense tiling: rows of 128 samples; TR rows per grid step.
    rows = -(-N // 128)                              # ceil(N / 128)
    if rows <= max_tile_rows:
        tr = max(8, ((rows + 7) // 8) * 8)           # single block, (8,128)-aligned
    else:
        tr = max_tile_rows                           # 1024*128 samples -> ~1 MiB x-tile
    num_row_blocks = -(-rows // tr)
    r_total = num_row_blocks * tr
    n_pad = r_total * 128

    # Pad N up to a whole number of blocks; padded rows are garbage and sliced off.
    x_pad = jnp.pad(xf, ((0, n_pad - N), (0, 0)))
    # (N_pad, 2) -> (2, N_pad) -> (2, R, 128): samples on the lane axis.
    x_lanes = x_pad.T.reshape(2, r_total, 128)

    out2d = pl.pallas_call(
        _gauss_pdf_kernel,
        out_shape=jax.ShapeDtypeStruct((r_total, 128), out_dtype),
        grid=(num_row_blocks,),
        in_specs=[
            # mu: two scalars, whole array in SMEM (no VMEM DMA stream).
            pl.BlockSpec(memory_space=pltpu.MemorySpace.SMEM),
            # x: (2, TR, 128) tile per grid step, double-buffered by Pallas.
            pl.BlockSpec((2, tr, 128), lambda i: (0, i, 0)),
        ],
        # lane-dense output slab -> unmasked vst stores.
        out_specs=pl.BlockSpec((tr, 128), lambda i: (i, 0)),
        compiler_params=pltpu.CompilerParams(
            dimension_semantics=("parallel",),
        ),
    )(muf, x_lanes)

    return out2d.reshape(n_pad)[:N]


if __name__ == "__main__":
    key = jax.random.PRNGKey(0)
    kx, kmu = jax.random.split(key)

    N, D = 8, 2                      # small shapes consistent with the module
    x = jax.random.normal(kx, (N, D), dtype=jnp.float32)
    mu = jax.random.normal(kmu, (D,), dtype=jnp.float32)   # the module's "parameter"

    out = jax.block_until_ready(my_gaussian_pdf(x, mu))

    # Pure-JAX reference mirroring the PyTorch expression exactly.
    cov = INV_GAUSS_VAR * jnp.eye(D, dtype=jnp.float32)
    d = x - mu
    ref = C_CONST * jnp.exp(-0.5 * jnp.diagonal(d @ cov @ d.T))

    assert out.shape == (N,)
    assert jnp.allclose(out, ref, atol=1e-5, rtol=1e-5), (out, ref)
    print("KERNEL_OK")
</pallas_src>

<mosaic_0001>
module attributes {stable_mosaic.version = 11 : i64} {
  func.func @_gauss_pdf_kernel(%arg0: i32, %arg1: memref<2xf32, #tpu.memory_space<smem>>, %arg2: memref<2x8x128xf32, #tpu.memory_space<vmem>>, %arg3: memref<8x128xf32, #tpu.memory_space<vmem>>) attributes {dimension_semantics = [#tpu.dimension_semantics<parallel>], iteration_bounds = array<i64: 1>, scalar_prefetch = 0 : i64, scratch_operands = 0 : i64, tpu.core_type = #tpu.core_type<tc>, window_params = [{transform_indices = @transform_0, window_bounds = array<i64: 2>}, {transform_indices = @transform_1, window_bounds = array<i64: 2, 8, 128>}, {transform_indices = @transform_2, window_bounds = array<i64: 8, 128>}]} {
    %c0 = arith.constant 0 : index
    %c0_0 = arith.constant 0 : index
    %c0_1 = arith.constant 0 : index
    %0 = vector.load %arg2[%c0, %c0_0, %c0_1] : memref<2x8x128xf32, #tpu.memory_space<vmem>>, vector<1x8x128xf32>
    %1 = vector.shape_cast %0 : vector<1x8x128xf32> to vector<8x128xf32>
    %c0_2 = arith.constant 0 : index
    %2 = memref.load %arg1[%c0_2] : memref<2xf32, #tpu.memory_space<smem>>
    %3 = vector.broadcast %2 : f32 to vector<8x128xf32>
    %4 = arith.subf %1, %3 : vector<8x128xf32>
    %c1 = arith.constant 1 : index
    %c0_3 = arith.constant 0 : index
    %c0_4 = arith.constant 0 : index
    %5 = vector.load %arg2[%c1, %c0_3, %c0_4] : memref<2x8x128xf32, #tpu.memory_space<vmem>>, vector<1x8x128xf32>
    %6 = vector.shape_cast %5 : vector<1x8x128xf32> to vector<8x128xf32>
    %c1_5 = arith.constant 1 : index
    %7 = memref.load %arg1[%c1_5] : memref<2xf32, #tpu.memory_space<smem>>
    %8 = vector.broadcast %7 : f32 to vector<8x128xf32>
    %9 = arith.subf %6, %8 : vector<8x128xf32>
    %10 = arith.mulf %4, %4 : vector<8x128xf32>
    %11 = arith.mulf %9, %9 : vector<8x128xf32>
    %12 = arith.addf %10, %11 : vector<8x128xf32>
    %cst = arith.constant -2.700000e-01 : f32
    %13 = vector.broadcast %cst : f32 to vector<8x128xf32>
    %14 = arith.mulf %13, %12 : vector<8x128xf32>
    %15 = math.exp %14 : vector<8x128xf32>
    %c0_6 = arith.constant 0 : index
    %c0_7 = arith.constant 0 : index
    %16 = vector.load %arg3[%c0_6, %c0_7] : memref<8x128xf32, #tpu.memory_space<vmem>>, vector<8x128xf32>
    tpu.vector_store %arg3[%c0_6, %c0_7], %15 {strides = array<i32>} : memref<8x128xf32, #tpu.memory_space<vmem>>, vector<8x128xf32>,
    return
  }
  func.func @transform_0(%arg0: i32) -> i32 {
    %c0_i32 = arith.constant 0 : i32
    %c0_i32_0 = arith.constant 0 : i32
    return %c0_i32 : i32
  }
  func.func @transform_1(%arg0: i32) -> (i32, i32, i32) {
    %c0_i32 = arith.constant 0 : i32
    %c0_i32_0 = arith.constant 0 : i32
    %c0_i32_1 = arith.constant 0 : i32
    return %c0_i32, %arg0, %c0_i32_0 : i32, i32, i32
  }
  func.func @transform_2(%arg0: i32) -> (i32, i32) {
    %c0_i32 = arith.constant 0 : i32
    %c0_i32_0 = arith.constant 0 : i32
    return %arg0, %c0_i32 : i32, i32
  }
}

</mosaic_0001>

<llo_original>
// kernel: tpu_custom_call.1
$region0: #{tpu_custom_call.1}
  #allocation0 [shape = 'u32[]', space=smem, size = 0x4, offset = 0x4, fixed_abs, tag = 'smem constant byte address 0x4 - core index']
  #allocation1 [shape = 'u32[144,128]{1,0:T(1,128)}', space=vmem, size = 0x12000, scoped, tag = 'internal scratch']
  %s0 = inlined_call_operand.hbm [shape: f32[2], index: 0, kind: input, shape index: {}]
  %s1 = inlined_call_operand.hbm [shape: f32[2,8,128], index: 1, kind: input, shape index: {}]
  %s2 = inlined_call_operand.hbm [shape: f32[8,128], index: 2, kind: output, shape index: {}]
  %s3 = sld [smem:[#allocation0]]
  $region26: #{tpu_custom_call.1} parent=0
    _
  %s5 = ssub.s32 1, %s3
  %s6 = scalar_select 0, %s5, %s3
  $region1: #{tpu_custom_call.1} parent=0
    #allocation2 [shape = 'u8[512]{0}', space=smem, size = 0x200, scoped, tag = 'input window, operand 0, single buffered']
    #allocation3 [shape = 's32[1]{0}', space=sflag, size = 0x4, scoped, tag = 'scoped memory for tpu_custom_call.1']
    #allocation4 [shape = 's32[1]{0}', space=sflag, size = 0x4, scoped, tag = 'scoped memory for tpu_custom_call.1']
    #allocation5 [shape = 's32[1]{0}', space=sflag, size = 0x4, scoped, tag = 'scoped memory for tpu_custom_call.1']
    #allocation6 [shape = 'u8[8192]{0}', space=vmem, size = 0x2000, scoped, tag = 'input window, operand 1, single buffered']
    #allocation7 [shape = 'u8[4096]{0}', space=vmem, size = 0x1000, scoped, tag = 'output window, operand 0, single buffered']
    %7 = vsyncpa [#allocation5], 0
    %8 = vsyncpa [#allocation3], 0
    %9 = vsyncpa [#allocation4], 0
    // Predicated region
    $region2: #{tpu_custom_call.1} parent=1 // pred_check
      _
    $region3: #{tpu_custom_call.1} parent=1 // pred_check_branch
      %11 = sbr.rel (0) target = $region5
    $region4: #{tpu_custom_call.1} parent=1 // pred_region
      %s13 = ssub.s32 16, 16
      %14 = vsyncadd [#allocation5], %s13
      %17 = dma.hbm_to_smem %s0, 16, [#allocation2], [#allocation5]
    $region5: #{tpu_custom_call.1} parent=1 // pred_fallthru
      _
    // Predicated region
    $region6: #{tpu_custom_call.1} parent=1 // pred_check
      _
    $region7: #{tpu_custom_call.1} parent=1 // pred_check_branch
      %19 = sbr.rel (0) target = $region9
    $region8: #{tpu_custom_call.1} parent=1 // pred_region
      %s21 = ssub.s32 256, 256
      %22 = vsyncadd [#allocation3], %s21
      %s23 = sshll.u32 [#allocation6], 4
      %s24 = int_to_ptr.vmem [resolvable:$true] %s23
      %29 = dma.hbm_to_vmem [thread:$0]  %s1, 256, %s24, [#allocation3], 128, 128, 8
    $region9: #{tpu_custom_call.1} parent=1 // pred_fallthru
      _
    // Predicated region
    $region10: #{tpu_custom_call.1} parent=1 // pred_check
      _
    $region11: #{tpu_custom_call.1} parent=1 // pred_check_branch
      %31 = sbr.rel (0) target = $region13
    $region12: #{tpu_custom_call.1} parent=1 // pred_region
      %32 = dma.done [#allocation5], 16
    $region13: #{tpu_custom_call.1} parent=1 // pred_fallthru
      _
    // Predicated region
    $region14: #{tpu_custom_call.1} parent=1 // pred_check
      _
    $region15: #{tpu_custom_call.1} parent=1 // pred_check_branch
      %34 = sbr.rel (0) target = $region17
    $region16: #{tpu_custom_call.1} parent=1 // pred_region
      %35 = dma.done [#allocation3], 256
    $region17: #{tpu_custom_call.1} parent=1 // pred_fallthru
      _
    %36 = sfence
    %v37 = vld [vmem:[#allocation6] sm:$0xff]
    %s38 = sld [smem:[#allocation2]]
    %v39 = vstv %s38
    %v40 = vsub.f32 %v37, %v39
    %s41 = scalar_lea.vmem [#allocation6], 8
    %v42 = vld [vmem:[%s41] sm:$0xff]
    %s43 = sld [smem:[#allocation2 + $0x1]]
    %v44 = vstv %s43
    %v45 = vsub.f32 %v42, %v44
    %v46 = vmul.f32 %v40, %v40
    %v47 = vmul.f32 %v45, %v45
    %v48 = vadd.f32 %v46, %v47
    %v49 = vmul.f32 %v48, -0.27
    %v50 = vmul.f32 %v49, 1.442695
    %v51 = vpow.pop %v50
    %52 = vst [vmem:[#allocation7] sm:$0xff] %v51
    // Predicated region
    $region18: #{tpu_custom_call.1} parent=1 // pred_check
      _
    $region19: #{tpu_custom_call.1} parent=1 // pred_check_branch
      %54 = sbr.rel (0) target = $region21
    $region20: #{tpu_custom_call.1} parent=1 // pred_region
      %s56 = ssub.s32 128, 128
      %57 = vsyncadd [#allocation4], %s56
      %s59 = sshll.u32 [#allocation7], 4
      %s60 = int_to_ptr.vmem [resolvable:$true] %s59
      %62 = dma.vmem_to_hbm [thread:$0]  %s60, 128, %s2, [#allocation4]
    $region21: #{tpu_custom_call.1} parent=1 // pred_fallthru
      _
    // Predicated region
    $region22: #{tpu_custom_call.1} parent=1 // pred_check
      _
    $region23: #{tpu_custom_call.1} parent=1 // pred_check_branch
      %64 = sbr.rel (0) target = $region25
    $region24: #{tpu_custom_call.1} parent=1 // pred_region
      %65 = dma.done [#allocation4], 128
    $region25: #{tpu_custom_call.1} parent=1 // pred_fallthru
      _
    %66 = vsyncpa [#allocation3], 1
    %67 = vsyncpa [#allocation4], 1
    %68 = vsyncpa [#allocation5], 1

</llo_original>
